<compile_context>
chip_gen: v7x
topology: tpu7x:2x2x1
jax: 0.10.0
libtpu: 0.0.40
codegen_flags: <defaults>
</compile_context>

<pallas_src>
import jax
import jax.numpy as jnp
from jax.experimental import pallas as pl
from jax.experimental.pallas import tpu as pltpu

HIDDEN_PAD = 128   # lane-dense padded hidden width (logical hidden = 64)
MAX_TILE_B = 1024  # batch rows per grid step (VMEM-safe on v5e/v6e/v7x)


def _round_up(n, m):
    return ((n + m - 1) // m) * m


def actor_forward_kernel(x_ref, w1_ref, b1_ref, w2_ref, b2_ref,
                         w3_ref, b3_ref, out_ref):
    """Fused 3-layer MLP for one batch tile.

    Layer 1 in f32 (tiny K), layers 2/3 with bf16 operands on the MXU and
    f32 accumulation; bias add / ReLU / tanh stay in f32 (tanh on the EUP
    slot is effectively free)."""
    x = x_ref[...]                                                 # f32 (TB, F)

    h1 = jnp.dot(x, w1_ref[...], preferred_element_type=jnp.float32)
    h1 = jnp.maximum(h1 + b1_ref[...], 0.0)                        # f32 (TB, 128)

    h2 = jnp.dot(h1.astype(jnp.bfloat16), w2_ref[...],
                 preferred_element_type=jnp.float32)
    h2 = jnp.maximum(h2 + b2_ref[...], 0.0)                        # f32 (TB, 128)

    mu = jnp.dot(h2.astype(jnp.bfloat16), w3_ref[...],
                 preferred_element_type=jnp.float32) + b3_ref[...]
    out_ref[...] = jnp.tanh(mu)                                    # f32 (TB, OUT_PAD)


def _pad_params(params, out_pad):
    """Zero-pad hidden 64->128 and action_dim->out_pad.  w1 stays f32
    (layer-1 accuracy, trivially cheap); w2/w3 cast to bf16 for the MXU.
    Padding rows/cols are exactly zero, so padded lanes stay zero through
    ReLU and never leak into real action columns."""
    w1, b1 = params["w1"], params["b1"]
    w2, b2 = params["w2"], params["b2"]
    w3, b3 = params["w3"], params["b3"]
    h = w2.shape[0]
    a = w3.shape[1]
    hp = HIDDEN_PAD - h
    ap = out_pad - a
    w1p = jnp.pad(w1, ((0, 0), (0, hp))).astype(jnp.float32)
    b1p = jnp.pad(b1, ((0, 0), (0, hp))).astype(jnp.float32)
    w2p = jnp.pad(w2, ((0, hp), (0, hp))).astype(jnp.bfloat16)
    b2p = jnp.pad(b2, ((0, 0), (0, hp))).astype(jnp.float32)
    w3p = jnp.pad(w3, ((0, hp), (0, ap))).astype(jnp.bfloat16)
    b3p = jnp.pad(b3, ((0, 0), (0, ap))).astype(jnp.float32)
    return w1p, b1p, w2p, b2p, w3p, b3p


def actor_forward(x, params, tile_batch=None):
    """x: [batch, feature_dim] f32; params: dict of f32 weights/biases
    (weights stored [in_dim, out_dim], biases [1, out_dim])."""
    batch, feat = x.shape
    action_dim = params["w3"].shape[1]
    out_pad = _round_up(action_dim, 8)   # narrow, lane-masked but tiny writeback

    # Batch tile: multiple of 16 rows.  Default aims for >= 2 grid steps so
    # v7x's two TensorCores both get work, while keeping tiles large.
    padded16 = _round_up(batch, 16)
    if tile_batch is None:
        half = _round_up(pl.cdiv(padded16, 2), 16)
        tb = max(16, min(MAX_TILE_B, half))
    else:
        tb = _round_up(tile_batch, 16)
    padded_batch = _round_up(batch, tb)
    grid = (padded_batch // tb,)

    # Only pad the remainder; x stays f32 (cast/scaling happens in-kernel).
    x_p = x if padded_batch == batch else jnp.pad(
        x, ((0, padded_batch - batch), (0, 0)))
    w1, b1, w2, b2, w3, b3 = _pad_params(params, out_pad)

    flops = 2 * padded_batch * (feat * HIDDEN_PAD
                                + HIDDEN_PAD * HIDDEN_PAD
                                + HIDDEN_PAD * out_pad)
    bytes_accessed = (x_p.size * 4                              # x (f32)
                      + w1.size * 4 + (w2.size + w3.size) * 2   # weights
                      + (b1.size + b2.size + b3.size) * 4       # biases
                      + padded_batch * out_pad * 4)             # output
    cost = pl.CostEstimate(flops=flops,
                           transcendentals=padded_batch * out_pad,
                           bytes_accessed=bytes_accessed)

    resident = lambda i: (0, 0)   # weights/biases: same block every grid step
    out_padded = pl.pallas_call(
        actor_forward_kernel,
        out_shape=jax.ShapeDtypeStruct((padded_batch, out_pad), jnp.float32),
        grid=grid,
        in_specs=[
            pl.BlockSpec((tb, feat), lambda i: (i, 0)),        # x tile (pipelined)
            pl.BlockSpec((feat, HIDDEN_PAD), resident),        # w1 (f32)
            pl.BlockSpec((1, HIDDEN_PAD), resident),           # b1
            pl.BlockSpec((HIDDEN_PAD, HIDDEN_PAD), resident),  # w2 (bf16)
            pl.BlockSpec((1, HIDDEN_PAD), resident),           # b2
            pl.BlockSpec((HIDDEN_PAD, out_pad), resident),     # w3 (bf16)
            pl.BlockSpec((1, out_pad), resident),              # b3
        ],
        out_specs=pl.BlockSpec((tb, out_pad), lambda i: (i, 0)),
        compiler_params=pltpu.CompilerParams(
            dimension_semantics=("parallel",)),  # v7x: shard tiles across 2 TCs
        cost_estimate=cost,
    )(x_p, w1, b1, w2, b2, w3, b3)

    if padded_batch != batch or out_pad != action_dim:
        return out_padded[:batch, :action_dim]
    return out_padded


def init_actor_params(key, feature_dim, action_dim, hidden=64):
    """Mirrors nn.Linear defaults (U(+/- 1/sqrt(fan_in))) and
    nn.init.uniform_(mu.weight, -0.001, 0.001)."""
    k1, k2, k3, k4, k5, k6 = jax.random.split(key, 6)

    def lin_init(kw, kb, fan_in, fan_out):
        bound = 1.0 / jnp.sqrt(jnp.float32(fan_in))
        w = jax.random.uniform(kw, (fan_in, fan_out), jnp.float32, -bound, bound)
        b = jax.random.uniform(kb, (1, fan_out), jnp.float32, -bound, bound)
        return w, b

    w1, b1 = lin_init(k1, k2, feature_dim, hidden)
    w2, b2 = lin_init(k3, k4, hidden, hidden)
    w3 = jax.random.uniform(k5, (hidden, action_dim), jnp.float32, -0.001, 0.001)
    b3_bound = 1.0 / jnp.sqrt(jnp.float32(hidden))
    b3 = jax.random.uniform(k6, (1, action_dim), jnp.float32, -b3_bound, b3_bound)
    return {"w1": w1, "b1": b1, "w2": w2, "b2": b2, "w3": w3, "b3": b3}


def actor_forward_ref(x, p):
    """Pure-JAX f32 reference (PyTorch semantics) for correctness check."""
    h1 = jnp.maximum(x @ p["w1"] + p["b1"], 0.0)
    h2 = jnp.maximum(h1 @ p["w2"] + p["b2"], 0.0)
    return jnp.tanh(h2 @ p["w3"] + p["b3"])


if __name__ == "__main__":
    feature_dim = 8
    action_dim = 4

    key = jax.random.PRNGKey(0)
    k_params, k_x, k_x2, k_x3 = jax.random.split(key, 4)
    params = init_actor_params(k_params, feature_dim, action_dim)

    # Small inference-style batch (padded to one 16-row tile internally).
    x = jax.random.normal(k_x, (2, feature_dim), dtype=jnp.float32)
    out = jax.block_until_ready(actor_forward(x, params))
    ref = actor_forward_ref(x, params)
    assert out.shape == (2, action_dim)
    assert jnp.allclose(out, ref, atol=1e-3, rtol=1e-3), \
        float(jnp.max(jnp.abs(out - ref)))

    # Multi-tile grid path with explicit tile (exercises remainder padding).
    x2 = jax.random.normal(k_x2, (40, feature_dim), dtype=jnp.float32)
    out2 = jax.block_until_ready(actor_forward(x2, params, tile_batch=16))
    ref2 = actor_forward_ref(x2, params)
    assert out2.shape == (40, action_dim)
    assert jnp.allclose(out2, ref2, atol=1e-3, rtol=1e-3), \
        float(jnp.max(jnp.abs(out2 - ref2)))

    # Typical TD3 training batch: default tiling picks >= 2 grid steps
    # (128-row tiles) so both v7x TensorCores are used.
    x3 = jax.random.normal(k_x3, (256, feature_dim), dtype=jnp.float32)
    out3 = jax.block_until_ready(actor_forward(x3, params))
    ref3 = actor_forward_ref(x3, params)
    assert out3.shape == (256, action_dim)
    assert jnp.allclose(out3, ref3, atol=1e-3, rtol=1e-3), \
        float(jnp.max(jnp.abs(out3 - ref3)))

    print("KERNEL_OK")
</pallas_src>

<mosaic_0001>
module attributes {stable_mosaic.version = 11 : i64} {
  func.func @actor_forward_kernel(%arg0: i32, %arg1: memref<16x8xf32, #tpu.memory_space<vmem>>, %arg2: memref<8x128xf32, #tpu.memory_space<vmem>>, %arg3: memref<1x128xf32, #tpu.memory_space<vmem>>, %arg4: memref<128x128xbf16, #tpu.memory_space<vmem>>, %arg5: memref<1x128xf32, #tpu.memory_space<vmem>>, %arg6: memref<128x8xbf16, #tpu.memory_space<vmem>>, %arg7: memref<1x8xf32, #tpu.memory_space<vmem>>, %arg8: memref<16x8xf32, #tpu.memory_space<vmem>>) attributes {dimension_semantics = [#tpu.dimension_semantics<parallel>], iteration_bounds = array<i64: 1>, scalar_prefetch = 0 : i64, scratch_operands = 0 : i64, tpu.core_type = #tpu.core_type<tc>, window_params = [{transform_indices = @transform_0, window_bounds = array<i64: 16, 8>}, {pipeline_mode = #tpu.pipeline_mode<synchronous>, transform_indices = @transform_1, window_bounds = array<i64: 8, 128>}, {pipeline_mode = #tpu.pipeline_mode<synchronous>, transform_indices = @transform_2, window_bounds = array<i64: 1, 128>}, {pipeline_mode = #tpu.pipeline_mode<synchronous>, transform_indices = @transform_3, window_bounds = array<i64: 128, 128>}, {pipeline_mode = #tpu.pipeline_mode<synchronous>, transform_indices = @transform_4, window_bounds = array<i64: 1, 128>}, {pipeline_mode = #tpu.pipeline_mode<synchronous>, transform_indices = @transform_5, window_bounds = array<i64: 128, 8>}, {pipeline_mode = #tpu.pipeline_mode<synchronous>, transform_indices = @transform_6, window_bounds = array<i64: 1, 8>}, {transform_indices = @transform_7, window_bounds = array<i64: 16, 8>}]} {
    %c0 = arith.constant 0 : index
    %c0_0 = arith.constant 0 : index
    %0 = vector.load %arg1[%c0, %c0_0] : memref<16x8xf32, #tpu.memory_space<vmem>>, vector<16x8xf32>
    %c0_1 = arith.constant 0 : index
    %c0_2 = arith.constant 0 : index
    %1 = vector.load %arg2[%c0_1, %c0_2] : memref<8x128xf32, #tpu.memory_space<vmem>>, vector<8x128xf32>
    %cst = arith.constant dense<0.000000e+00> : vector<16x128xf32>
    %2 = tpu.matmul %0, %1, %cst {dimension_numbers = #tpu.dot_dimension_numbers<[1], [0], [0], [1], [0, 0, 1, 1], [], []>} : vector<16x8xf32>, vector<8x128xf32>, vector<16x128xf32> -> vector<16x128xf32>
    %c0_3 = arith.constant 0 : index
    %c0_4 = arith.constant 0 : index
    %3 = vector.load %arg3[%c0_3, %c0_4] : memref<1x128xf32, #tpu.memory_space<vmem>>, vector<1x128xf32>
    %4 = vector.broadcast %3 : vector<1x128xf32> to vector<16x128xf32>
    %5 = arith.addf %2, %4 : vector<16x128xf32>
    %cst_5 = arith.constant 0.000000e+00 : f32
    %6 = vector.broadcast %cst_5 : f32 to vector<16x128xf32>
    %7 = arith.maximumf %5, %6 : vector<16x128xf32>
    %8 = arith.truncf %7 : vector<16x128xf32> to vector<16x128xbf16>
    %c0_6 = arith.constant 0 : index
    %c0_7 = arith.constant 0 : index
    %9 = vector.load %arg4[%c0_6, %c0_7] : memref<128x128xbf16, #tpu.memory_space<vmem>>, vector<128x128xbf16>
    %cst_8 = arith.constant dense<0.000000e+00> : vector<16x128xf32>
    %10 = tpu.matmul %8, %9, %cst_8 {dimension_numbers = #tpu.dot_dimension_numbers<[1], [0], [0], [1], [0, 0, 1, 1], [], []>} : vector<16x128xbf16>, vector<128x128xbf16>, vector<16x128xf32> -> vector<16x128xf32>
    %c0_9 = arith.constant 0 : index
    %c0_10 = arith.constant 0 : index
    %11 = vector.load %arg5[%c0_9, %c0_10] : memref<1x128xf32, #tpu.memory_space<vmem>>, vector<1x128xf32>
    %12 = vector.broadcast %11 : vector<1x128xf32> to vector<16x128xf32>
    %13 = arith.addf %10, %12 : vector<16x128xf32>
    %cst_11 = arith.constant 0.000000e+00 : f32
    %14 = vector.broadcast %cst_11 : f32 to vector<16x128xf32>
    %15 = arith.maximumf %13, %14 : vector<16x128xf32>
    %16 = arith.truncf %15 : vector<16x128xf32> to vector<16x128xbf16>
    %c0_12 = arith.constant 0 : index
    %c0_13 = arith.constant 0 : index
    %17 = vector.load %arg6[%c0_12, %c0_13] : memref<128x8xbf16, #tpu.memory_space<vmem>>, vector<128x8xbf16>
    %cst_14 = arith.constant dense<0.000000e+00> : vector<16x8xf32>
    %18 = tpu.matmul %16, %17, %cst_14 {dimension_numbers = #tpu.dot_dimension_numbers<[1], [0], [0], [1], [0, 0, 1, 1], [], []>} : vector<16x128xbf16>, vector<128x8xbf16>, vector<16x8xf32> -> vector<16x8xf32>
    %c0_15 = arith.constant 0 : index
    %c0_16 = arith.constant 0 : index
    %19 = vector.load %arg7[%c0_15, %c0_16] : memref<1x8xf32, #tpu.memory_space<vmem>>, vector<1x8xf32>
    %20 = vector.broadcast %19 : vector<1x8xf32> to vector<16x8xf32>
    %21 = arith.addf %18, %20 : vector<16x8xf32>
    %22 = math.tanh %21 : vector<16x8xf32>
    %c0_17 = arith.constant 0 : index
    %c0_18 = arith.constant 0 : index
    %23 = vector.load %arg8[%c0_17, %c0_18] : memref<16x8xf32, #tpu.memory_space<vmem>>, vector<16x8xf32>
    tpu.vector_store %arg8[%c0_17, %c0_18], %22 {strides = array<i32>} : memref<16x8xf32, #tpu.memory_space<vmem>>, vector<16x8xf32>,
    return
  }
  func.func @transform_0(%arg0: i32) -> (i32, i32) {
    %c0_i32 = arith.constant 0 : i32
    %c0_i32_0 = arith.constant 0 : i32
    return %arg0, %c0_i32 : i32, i32
  }
  func.func @transform_1(%arg0: i32) -> (i32, i32) {
    %c0_i32 = arith.constant 0 : i32
    %c0_i32_0 = arith.constant 0 : i32
    %c0_i32_1 = arith.constant 0 : i32
    return %c0_i32, %c0_i32_0 : i32, i32
  }
  func.func @transform_2(%arg0: i32) -> (i32, i32) {
    %c0_i32 = arith.constant 0 : i32
    %c0_i32_0 = arith.constant 0 : i32
    %c0_i32_1 = arith.constant 0 : i32
    return %c0_i32, %c0_i32_0 : i32, i32
  }
  func.func @transform_3(%arg0: i32) -> (i32, i32) {
    %c0_i32 = arith.constant 0 : i32
    %c0_i32_0 = arith.constant 0 : i32
    %c0_i32_1 = arith.constant 0 : i32
    return %c0_i32, %c0_i32_0 : i32, i32
  }
  func.func @transform_4(%arg0: i32) -> (i32, i32) {
    %c0_i32 = arith.constant 0 : i32
    %c0_i32_0 = arith.constant 0 : i32
    %c0_i32_1 = arith.constant 0 : i32
    return %c0_i32, %c0_i32_0 : i32, i32
  }
  func.func @transform_5(%arg0: i32) -> (i32, i32) {
    %c0_i32 = arith.constant 0 : i32
    %c0_i32_0 = arith.constant 0 : i32
    %c0_i32_1 = arith.constant 0 : i32
    return %c0_i32, %c0_i32_0 : i32, i32
  }
  func.func @transform_6(%arg0: i32) -> (i32, i32) {
    %c0_i32 = arith.constant 0 : i32
    %c0_i32_0 = arith.constant 0 : i32
    %c0_i32_1 = arith.constant 0 : i32
    return %c0_i32, %c0_i32_0 : i32, i32
  }
  func.func @transform_7(%arg0: i32) -> (i32, i32) {
    %c0_i32 = arith.constant 0 : i32
    %c0_i32_0 = arith.constant 0 : i32
    return %arg0, %c0_i32 : i32, i32
  }
}

</mosaic_0001>

<llo_original>
// kernel: tpu_custom_call.1
$region0: #{tpu_custom_call.1}
  #allocation0 [shape = 'u32[]', space=smem, size = 0x4, offset = 0x4, fixed_abs, tag = 'smem constant byte address 0x4 - core index']
  #allocation1 [shape = 'u32[144,128]{1,0:T(1,128)}', space=vmem, size = 0x12000, scoped, tag = 'internal scratch']
  %s0 = inlined_call_operand.vmem [shape: f32[16,8], index: 0, kind: input, shape index: {}]
  %s1 = inlined_call_operand.vmem [shape: f32[8,128], index: 1, kind: input, shape index: {}]
  %s2 = inlined_call_operand.vmem [shape: f32[1,128], index: 2, kind: input, shape index: {}]
  %s3 = inlined_call_operand.vmem [shape: bf16[128,128], index: 3, kind: input, shape index: {}]
  %s4 = inlined_call_operand.vmem [shape: f32[1,128], index: 4, kind: input, shape index: {}]
  %s5 = inlined_call_operand.vmem [shape: bf16[128,8], index: 5, kind: input, shape index: {}]
  %s6 = inlined_call_operand.vmem [shape: f32[1,8], index: 6, kind: input, shape index: {}]
  %s7 = inlined_call_operand.vmem [shape: f32[16,8], index: 7, kind: output, shape index: {}]
  %s8 = sld [smem:[#allocation0]]
  $region38: #{tpu_custom_call.1} parent=0
    _
  %s10 = ssub.s32 1, %s8
  %s11 = scalar_select 0, %s10, %s8
  // Predicated region
  $region2: #{tpu_custom_call.1} parent=0 // pred_check
    _
  $region3: #{tpu_custom_call.1} parent=0 // pred_check_branch
    %13 = sbr.rel (0) target = $region5
  $region4: #{tpu_custom_call.1} parent=0 // pred_region
    _
  $region5: #{tpu_custom_call.1} parent=0 // pred_fallthru
    _
  // Predicated region
  $region6: #{tpu_custom_call.1} parent=0 // pred_check
    _
  $region7: #{tpu_custom_call.1} parent=0 // pred_check_branch
    %15 = sbr.rel (0) target = $region9
  $region8: #{tpu_custom_call.1} parent=0 // pred_region
    _
  $region9: #{tpu_custom_call.1} parent=0 // pred_fallthru
    _
  // Predicated region
  $region10: #{tpu_custom_call.1} parent=0 // pred_check
    _
  $region11: #{tpu_custom_call.1} parent=0 // pred_check_branch
    %17 = sbr.rel (0) target = $region13
  $region12: #{tpu_custom_call.1} parent=0 // pred_region
    _
  $region13: #{tpu_custom_call.1} parent=0 // pred_fallthru
    _
  // Predicated region
  $region14: #{tpu_custom_call.1} parent=0 // pred_check
    _
  $region15: #{tpu_custom_call.1} parent=0 // pred_check_branch
    %19 = sbr.rel (0) target = $region17
  $region16: #{tpu_custom_call.1} parent=0 // pred_region
    _
  $region17: #{tpu_custom_call.1} parent=0 // pred_fallthru
    _
  // Predicated region
  $region18: #{tpu_custom_call.1} parent=0 // pred_check
    _
  $region19: #{tpu_custom_call.1} parent=0 // pred_check_branch
    %21 = sbr.rel (0) target = $region21
  $region20: #{tpu_custom_call.1} parent=0 // pred_region
    _
  $region21: #{tpu_custom_call.1} parent=0 // pred_fallthru
    _
  // Predicated region
  $region22: #{tpu_custom_call.1} parent=0 // pred_check
    _
  $region23: #{tpu_custom_call.1} parent=0 // pred_check_branch
    %23 = sbr.rel (0) target = $region25
  $region24: #{tpu_custom_call.1} parent=0 // pred_region
    _
  $region25: #{tpu_custom_call.1} parent=0 // pred_fallthru
    _
  // Predicated region
  $region26: #{tpu_custom_call.1} parent=0 // pred_check
    _
  $region27: #{tpu_custom_call.1} parent=0 // pred_check_branch
    %25 = sbr.rel (0) target = $region29
  $region28: #{tpu_custom_call.1} parent=0 // pred_region
    _
  $region29: #{tpu_custom_call.1} parent=0 // pred_fallthru
    _
  %v27 = vld [vmem:[%s0] sm:$0xff]
  %v28 = vld [vmem:[%s0 + $0x8] sm:$0xff]
  %v29 = vld [vmem:[%s1] sm:$0xff]
  %v30 = vld [vmem:[%s2] sm:$0x1]
  %v32 = vlaneseq
  %v33 = vshrl.u32 %v32, 7
  %v34 = vsub.s32 0, %v33
  %v35 = vrot.slane %v30, %v34
  %vm37 = vcmask 64512
  %v39 = vsel %vm37, %v27, 0
  %v42 = vsel %vm37, %v28, 0
  %44 = vmatprep.subr.mxu0 0.0
  %45 = vmatpush1.msra.mxu0 %v29
  %46 = vmatprep.subr.mxu0 0.0
  %47 = vmatpush1.msra.mxu0 0.0
  %48 = vmatprep.subr.mxu0 0.0
  %49 = vmatpush1.msra.mxu0 0.0
  %50 = vmatprep.subr.mxu0 0.0
  %51 = vmatpush1.msra.mxu0 0.0
  %52 = vmatprep.subr.mxu0 0.0
  %53 = vmatpush1.msra.mxu0 0.0
  %54 = vmatprep.subr.mxu0 0.0
  %55 = vmatpush1.msra.mxu0 0.0
  %56 = vmatprep.subr.mxu0 0.0
  %57 = vmatpush1.msra.mxu0 0.0
  %58 = vmatprep.subr.mxu0 0.0
  %59 = vmatpush1.msra.mxu0 0.0
  %60 = vmatprep.subr.mxu0 0.0
  %61 = vmatpush1.msra.mxu0 0.0
  %62 = vmatprep.subr.mxu0 0.0
  %63 = vmatpush1.msra.mxu0 0.0
  %64 = vmatprep.subr.mxu0 0.0
  %65 = vmatpush1.msra.mxu0 0.0
  %66 = vmatprep.subr.mxu0 0.0
  %67 = vmatpush1.msra.mxu0 0.0
  %68 = vmatprep.subr.mxu0 0.0
  %69 = vmatpush1.msra.mxu0 0.0
  %70 = vmatprep.subr.mxu0 0.0
  %71 = vmatpush1.msra.mxu0 0.0
  %72 = vmatprep.subr.mxu0 0.0
  %73 = vmatpush1.msra.mxu0 0.0
  %74 = vmatprep.subr.mxu0 0.0
  %75 = vmatpush1.msra.mxu0 0.0
  %76 = vmatprep.subr.mxu0 0.0
  %77 = vmatpush1.msra.mxu0 0.0
  %78 = vmatprep.subr.mxu0 0.0
  %79 = vmatpush1.msra.mxu0 0.0
  %80 = vmatprep.subr.mxu0 0.0
  %81 = vmatpush1.msra.mxu0 0.0
  %82 = vmatprep.subr.mxu0 0.0
  %83 = vmatpush1.msra.mxu0 0.0
  %84 = vmatprep.subr.mxu0 0.0
  %85 = vmatpush1.msra.mxu0 0.0
  %86 = vmatprep.subr.mxu0 0.0
  %87 = vmatpush1.msra.mxu0 0.0
  %88 = vmatprep.subr.mxu0 0.0
  %89 = vmatpush1.msra.mxu0 0.0
  %90 = vmatprep.subr.mxu0 0.0
  %91 = vmatpush1.msra.mxu0 0.0
  %92 = vmatprep.subr.mxu0 0.0
  %93 = vmatpush1.msra.mxu0 0.0
  %94 = vmatprep.subr.mxu0 0.0
  %95 = vmatpush1.msra.mxu0 0.0
  %96 = vmatprep.subr.mxu0 0.0
  %97 = vmatpush1.msra.mxu0 0.0
  %98 = vmatprep.subr.mxu0 0.0
  %99 = vmatpush1.msra.mxu0 0.0
  %100 = vmatprep.subr.mxu0 0.0
  %101 = vmatpush1.msra.mxu0 0.0
  %102 = vmatprep.subr.mxu0 0.0
  %103 = vmatpush1.msra.mxu0 0.0
  %104 = vmatprep.subr.mxu0 0.0
  %105 = vmatpush1.msra.mxu0 0.0
  %106 = vmatprep.subr.mxu0 0.0
  %107 = vmatpush1.msra.mxu0 0.0
  %108 = vmatprep.mubr.f32.mxu0 0.0
  %109 = vmatmul.mubr.f32.gmra.mrb[0].mxu0 %v39
  %v110 = vpop.f32.mrb[0].mxu0
  %v111 = vadd.f32 %v35, %v110
  %v112 = vpop.f32.mrb[0].mxu0
  %113 = vmatprep.mubr.f32.mxu0 0.0
  %114 = vmatmul.mubr.f32.gmra.mrb[0].mxu0 %v42
  %v115 = vpop.f32.mrb[0].mxu0
  %v116 = vadd.f32 %v35, %v115
  %v117 = vpop.f32.mrb[0].mxu0
  %118 = vdwg.mxu0
  %v119 = vmax.f32 %v111, 0.0
  %v120 = vmax.f32 %v116, 0.0
  %v121 = vpack.c.bf16 %v120, %v119
  %v122 = vld [vmem:[%s3] sm:$0xf]
  %v123 = vld [vmem:[%s3 + $0x4] sm:$0xf]
  %v124 = vld [vmem:[%s3 + $0x8] sm:$0xf]
  %v125 = vld [vmem:[%s3 + $0xc] sm:$0xf]
  %v126 = vld [vmem:[%s3 + $0x10] sm:$0xf]
  %v127 = vld [vmem:[%s3 + $0x14] sm:$0xf]
  %v128 = vld [vmem:[%s3 + $0x18] sm:$0xf]
  %v129 = vld [vmem:[%s3 + $0x1c] sm:$0xf]
  %v130 = vld [vmem:[%s3 + $0x20] sm:$0xf]
  %v131 = vld [vmem:[%s3 + $0x24] sm:$0xf]
  %v132 = vld [vmem:[%s3 + $0x28] sm:$0xf]
  %v133 = vld [vmem:[%s3 + $0x2c] sm:$0xf]
  %v134 = vld [vmem:[%s3 + $0x30] sm:$0xf]
  %v135 = vld [vmem:[%s3 + $0x34] sm:$0xf]
  %v136 = vld [vmem:[%s3 + $0x38] sm:$0xf]
  %v137 = vld [vmem:[%s3 + $0x3c] sm:$0xf]
  %v138 = vld [vmem:[%s4] sm:$0x1]
  %v140 = vlaneseq
  %v141 = vshrl.u32 %v140, 7
  %v142 = vsub.s32 0, %v141
  %v143 = vrot.slane %v138, %v142
  %v161 = vunpack.c.l.b16 %v122
  %v162 = vunpack.c.l.b16 %v123
  %v163 = vunpack.c.l.b16 %v124
  %v164 = vunpack.c.l.b16 %v125
  %v165 = vunpack.c.l.b16 %v126
  %v166 = vunpack.c.l.b16 %v127
  %v167 = vunpack.c.l.b16 %v128
  %v168 = vunpack.c.l.b16 %v129
  %v169 = vunpack.c.l.b16 %v130
  %v170 = vunpack.c.l.b16 %v131
  %v171 = vunpack.c.l.b16 %v132
  %v172 = vunpack.c.l.b16 %v133
  %v173 = vunpack.c.l.b16 %v134
  %v174 = vunpack.c.l.b16 %v135
  %v175 = vunpack.c.l.b16 %v136
  %v176 = vunpack.c.l.b16 %v137
  %v177 = vpack.c.b16 %v162, %v161
  %v178 = vpack.c.b16 %v164, %v163
  %v179 = vpack.c.b16 %v166, %v165
  %v180 = vpack.c.b16 %v168, %v167
  %v181 = vpack.c.b16 %v170, %v169
  %v182 = vpack.c.b16 %v172, %v171
  %v183 = vpack.c.b16 %v174, %v173
  %v184 = vpack.c.b16 %v176, %v175
  %193 = vmatprep.subr.bf16.mxu0 0
  %194 = vmatpush1.bf16.msra.mxu0 %v177
  %195 = vmatprep.subr.bf16.mxu0 0
  %196 = vmatpush1.bf16.msra.mxu0 %v178
  %197 = vmatprep.subr.bf16.mxu0 0
  %198 = vmatpush1.bf16.msra.mxu0 %v179
  %199 = vmatprep.subr.bf16.mxu0 0
  %200 = vmatpush1.bf16.msra.mxu0 %v180
  %201 = vmatprep.subr.bf16.mxu0 0
  %202 = vmatpush1.bf16.msra.mxu0 %v181
  %203 = vmatprep.subr.bf16.mxu0 0
  %204 = vmatpush1.bf16.msra.mxu0 %v182
  %205 = vmatprep.subr.bf16.mxu0 0
  %206 = vmatpush1.bf16.msra.mxu0 %v183
  %207 = vmatprep.subr.bf16.mxu0 0
  %208 = vmatpush1.bf16.msra.mxu0 %v184
  %209 = vmatprep.subr.bf16.mxu0 0
  %210 = vmatpush1.bf16.msra.mxu0 0
  %211 = vmatprep.subr.bf16.mxu0 0
  %212 = vmatpush1.bf16.msra.mxu0 0
  %213 = vmatprep.subr.bf16.mxu0 0
  %214 = vmatpush1.bf16.msra.mxu0 0
  %215 = vmatprep.subr.bf16.mxu0 0
  %216 = vmatpush1.bf16.msra.mxu0 0
  %217 = vmatprep.subr.bf16.mxu0 0
  %218 = vmatpush1.bf16.msra.mxu0 0
  %219 = vmatprep.subr.bf16.mxu0 0
  %220 = vmatpush1.bf16.msra.mxu0 0
  %221 = vmatprep.subr.bf16.mxu0 0
  %222 = vmatpush1.bf16.msra.mxu0 0
  %223 = vmatprep.subr.bf16.mxu0 0
  %224 = vmatpush1.bf16.msra.mxu0 0
  %225 = vmatprep.mubr.bf16.mxu0 0
  %226 = vmatmul.mubr.bf16.gmra.mrb[0].mxu0 %v121
  %v227 = vpop.f32.mrb[0].mxu0
  %v228 = vadd.f32 %v143, %v227
  %v229 = vpop.f32.mrb[0].mxu0
  %v230 = vpop.f32.mrb[0].mxu0
  %v231 = vadd.f32 %v143, %v230
  %v232 = vpop.f32.mrb[0].mxu0
  %233 = vdwg.mxu0
  %v234 = vmax.f32 %v228, 0.0
  %v235 = vmax.f32 %v231, 0.0
  %v236 = vpack.c.bf16 %v235, %v234
  %v237 = vld [vmem:[%s5] sm:$0xf]
  %v238 = vld [vmem:[%s5 + $0x4] sm:$0xf]
  %v239 = vld [vmem:[%s5 + $0x8] sm:$0xf]
  %v240 = vld [vmem:[%s5 + $0xc] sm:$0xf]
  %v241 = vld [vmem:[%s5 + $0x10] sm:$0xf]
  %v242 = vld [vmem:[%s5 + $0x14] sm:$0xf]
  %v243 = vld [vmem:[%s5 + $0x18] sm:$0xf]
  %v244 = vld [vmem:[%s5 + $0x1c] sm:$0xf]
  %v245 = vld [vmem:[%s5 + $0x20] sm:$0xf]
  %v246 = vld [vmem:[%s5 + $0x24] sm:$0xf]
  %v247 = vld [vmem:[%s5 + $0x28] sm:$0xf]
  %v248 = vld [vmem:[%s5 + $0x2c] sm:$0xf]
  %v249 = vld [vmem:[%s5 + $0x30] sm:$0xf]
  %v250 = vld [vmem:[%s5 + $0x34] sm:$0xf]
  %v251 = vld [vmem:[%s5 + $0x38] sm:$0xf]
  %v252 = vld [vmem:[%s5 + $0x3c] sm:$0xf]
  %v253 = vld [vmem:[%s6] sm:$0x1]
  %v255 = vlaneseq
  %v256 = vshrl.u32 %v255, 7
  %v257 = vsub.s32 0, %v256
  %v258 = vrot.slane %v253, %v257
  %v276 = vunpack.c.l.b16 %v237
  %v277 = vunpack.c.l.b16 %v238
  %v278 = vunpack.c.l.b16 %v239
  %v279 = vunpack.c.l.b16 %v240
  %v280 = vunpack.c.l.b16 %v241
  %v281 = vunpack.c.l.b16 %v242
  %v282 = vunpack.c.l.b16 %v243
  %v283 = vunpack.c.l.b16 %v244
  %v284 = vunpack.c.l.b16 %v245
  %v285 = vunpack.c.l.b16 %v246
  %v286 = vunpack.c.l.b16 %v247
  %v287 = vunpack.c.l.b16 %v248
  %v288 = vunpack.c.l.b16 %v249
  %v289 = vunpack.c.l.b16 %v250
  %v290 = vunpack.c.l.b16 %v251
  %v291 = vunpack.c.l.b16 %v252
  %v292 = vpack.c.b16 %v277, %v276
  %v293 = vpack.c.b16 %v279, %v278
  %v294 = vpack.c.b16 %v281, %v280
  %v295 = vpack.c.b16 %v283, %v282
  %v296 = vpack.c.b16 %v285, %v284
  %v297 = vpack.c.b16 %v287, %v286
  %v298 = vpack.c.b16 %v289, %v288
  %v299 = vpack.c.b16 %v291, %v290
  %308 = vmatprep.subr.bf16.mxu0 0
  %309 = vmatpush1.bf16.msra.mxu0 %v292
  %310 = vmatprep.subr.bf16.mxu0 0
  %311 = vmatpush1.bf16.msra.mxu0 %v293
  %312 = vmatprep.subr.bf16.mxu0 0
  %313 = vmatpush1.bf16.msra.mxu0 %v294
  %314 = vmatprep.subr.bf16.mxu0 0
  %315 = vmatpush1.bf16.msra.mxu0 %v295
  %316 = vmatprep.subr.bf16.mxu0 0
  %317 = vmatpush1.bf16.msra.mxu0 %v296
  %318 = vmatprep.subr.bf16.mxu0 0
  %319 = vmatpush1.bf16.msra.mxu0 %v297
  %320 = vmatprep.subr.bf16.mxu0 0
  %321 = vmatpush1.bf16.msra.mxu0 %v298
  %322 = vmatprep.subr.bf16.mxu0 0
  %323 = vmatpush1.bf16.msra.mxu0 %v299
  %324 = vmatprep.subr.bf16.mxu0 0
  %325 = vmatpush1.bf16.msra.mxu0 0
  %326 = vmatprep.subr.bf16.mxu0 0
  %327 = vmatpush1.bf16.msra.mxu0 0
  %328 = vmatprep.subr.bf16.mxu0 0
  %329 = vmatpush1.bf16.msra.mxu0 0
  %330 = vmatprep.subr.bf16.mxu0 0
  %331 = vmatpush1.bf16.msra.mxu0 0
  %332 = vmatprep.subr.bf16.mxu0 0
  %333 = vmatpush1.bf16.msra.mxu0 0
  %334 = vmatprep.subr.bf16.mxu0 0
  %335 = vmatpush1.bf16.msra.mxu0 0
  %336 = vmatprep.subr.bf16.mxu0 0
  %337 = vmatpush1.bf16.msra.mxu0 0
  %338 = vmatprep.subr.bf16.mxu0 0
  %339 = vmatpush1.bf16.msra.mxu0 0
  %340 = vmatprep.mubr.bf16.mxu0 0
  %341 = vmatmul.mubr.bf16.gmra.mrb[0].mxu0 %v236
  %v342 = vpop.f32.mrb[0].mxu0
  %v343 = vadd.f32 %v258, %v342
  %v344 = vpop.f32.mrb[0].mxu0
  %v345 = vpop.f32.mrb[0].mxu0
  %v346 = vadd.f32 %v258, %v345
  %v347 = vpop.f32.mrb[0].mxu0
  %348 = vdwg.mxu0
  %v349 = vtanh.pop %v343
  %v350 = vtanh.pop %v346
  %351 = vst.msk [vmem:[%s7] sm:$0xff] %vm37, %v349
  %352 = vst.msk [vmem:[%s7 + $0x8] sm:$0xff] %vm37, %v350
  // Predicated region
  $region30: #{tpu_custom_call.1} parent=0 // pred_check
    _
  $region31: #{tpu_custom_call.1} parent=0 // pred_check_branch
    %354 = sbr.rel (0) target = $region33
  $region32: #{tpu_custom_call.1} parent=0 // pred_region
    _
  $region33: #{tpu_custom_call.1} parent=0 // pred_fallthru
    _
  // Predicated region
  $region34: #{tpu_custom_call.1} parent=0 // pred_check
    _
  $region35: #{tpu_custom_call.1} parent=0 // pred_check_branch
    %356 = sbr.rel (0) target = $region37
  $region36: #{tpu_custom_call.1} parent=0 // pred_region
    _
  $region37: #{tpu_custom_call.1} parent=0 // pred_fallthru
    _

</llo_original>
